<compile_context>
chip_gen: v7x
topology: tpu7x:2x2x1
jax: 0.10.0
libtpu: 0.0.40
codegen_flags: <defaults>
</compile_context>

<pallas_src>
import jax
import jax.numpy as jnp
from jax.experimental import pallas as pl
from jax.experimental.pallas import tpu as pltpu


def _sharp_sigmoid_kernel(scale_ref, x_ref, o_ref):
    s = scale_ref[0, 0]                       # f32 scalar from SMEM
    x = x_ref[...].astype(jnp.float32)        # compute in f32 (free, mem-bound)
    o_ref[...] = jax.nn.sigmoid(s * x).astype(o_ref.dtype)


def _sublane_multiple(dtype):
    # 8 for 32-bit, 16 for bf16/fp16, 32 for int8/fp8 (sublane packing).
    itemsize = jnp.dtype(dtype).itemsize
    return max(8, 32 // max(1, itemsize))


def _block_policy():
    """Returns (target_block_bytes, vmem_limit_bytes_or_None) per TPU gen."""
    try:
        kind = jax.devices()[0].device_kind.lower()
    except Exception:
        kind = ""
    if "v7" in kind or "7x" in kind:
        # 64 MiB physical VMEM, 3.2 TB/s: big blocks, raise scoped limit.
        return 8 * 1024 * 1024, 48 * 1024 * 1024
    if "v6" in kind:
        # 128 MiB physical VMEM: 4 MiB blocks, raised limit for headroom.
        return 4 * 1024 * 1024, 48 * 1024 * 1024
    # v5e (16 MiB scoped default) / unknown: stay conservative.
    return 2 * 1024 * 1024, None


@jax.jit
def sharp_scaled_sigmoid(x, scale=50.0):
    """Computes sigmoid(scale * x) elementwise with a Pallas TPU kernel.

    Accepts any-rank input; matches torch.sigmoid(scale * x) (same shape,
    same dtype).
    """
    orig_shape = x.shape
    orig_dtype = x.dtype
    total = x.size

    if total == 0:
        return x  # empty input guard

    itemsize = jnp.dtype(orig_dtype).itemsize
    sub = _sublane_multiple(orig_dtype)
    block_bytes, vmem_limit = _block_policy()

    # ---- Pick a lane-dense width -------------------------------------------
    padded = False
    last = orig_shape[-1] if x.ndim >= 1 else 1
    if x.ndim >= 1 and last % 128 == 0:
        # Layout-preserving: keep the existing minor dim, collapse leading dims
        # (avoids a hidden HBM relayout; cheapest when shape[-2] is 8-aligned).
        lane_width = last
        x2d = x.reshape(-1, lane_width)
    else:
        lane_width = None
        for cand in (2048, 1024, 512, 256, 128):
            if total % cand == 0:
                lane_width = cand
                break
        if lane_width is None:
            # Odd total: pad the flat vector to a multiple of 128 and slice
            # the result afterwards (bounded, keeps unmasked stores).
            lane_width = 1024 if total >= 1024 else 128
            padded_total = ((total + lane_width - 1) // lane_width) * lane_width
            x_flat = jnp.pad(x.reshape(-1), (0, padded_total - total))
            x2d = x_flat.reshape(-1, lane_width)
            padded = True
        else:
            x2d = x.reshape(-1, lane_width)

    rows = x2d.shape[0]
    total_bytes = rows * lane_width * itemsize

    # ---- Row tiling ----------------------------------------------------------
    target_rows = block_bytes // (lane_width * itemsize)
    target_rows = max(sub, (target_rows // sub) * sub)
    tile_rows = rows if target_rows >= rows else target_rows

    # Guarantee grid >= 2 for non-tiny arrays so both v7x TCs get work and the
    # read/compute/write pipeline has something to overlap.
    if total_bytes > 2 * 1024 * 1024 and rows >= 2 * sub:
        half_rows = max(sub, (((rows + 1) // 2) // sub) * sub)
        tile_rows = min(tile_rows, half_rows)

    grid = (pl.cdiv(rows, tile_rows),)

    # ---- pallas_call ---------------------------------------------------------
    scale_arr = jnp.asarray(scale, dtype=jnp.float32).reshape(1, 1)

    cp_kwargs = dict(dimension_semantics=("parallel",))
    if vmem_limit is not None:
        cp_kwargs["vmem_limit_bytes"] = vmem_limit

    n_elems = rows * lane_width
    cost = pl.CostEstimate(
        flops=n_elems,
        transcendentals=n_elems,
        bytes_accessed=2 * n_elems * itemsize,
    )

    out2d = pl.pallas_call(
        _sharp_sigmoid_kernel,
        out_shape=jax.ShapeDtypeStruct((rows, lane_width), orig_dtype),
        grid=grid,
        in_specs=[
            pl.BlockSpec(memory_space=pltpu.MemorySpace.SMEM),  # scale (1,1)
            pl.BlockSpec((tile_rows, lane_width), lambda i: (i, 0)),
        ],
        out_specs=pl.BlockSpec((tile_rows, lane_width), lambda i: (i, 0)),
        compiler_params=pltpu.CompilerParams(**cp_kwargs),
        cost_estimate=cost,
    )(scale_arr, x2d)

    if padded:
        return out2d.reshape(-1)[:total].reshape(orig_shape)
    return out2d.reshape(orig_shape)


if __name__ == "__main__":
    key = jax.random.PRNGKey(0)
    x = jax.random.normal(key, (2, 4, 16, 16), dtype=jnp.float32)

    y = sharp_scaled_sigmoid(x, scale=50.0)
    y = jax.block_until_ready(y)

    # Reference check (plain JAX) to validate semantics.
    y_ref = jax.nn.sigmoid(50.0 * x)
    assert y.shape == x.shape and y.dtype == x.dtype
    assert jnp.allclose(y, y_ref, atol=1e-6, rtol=1e-6)

    # Also exercise the odd-total (pad) path and a bf16 input.
    x_odd = jax.random.normal(jax.random.PRNGKey(1), (3, 5, 7), dtype=jnp.float32)
    y_odd = jax.block_until_ready(sharp_scaled_sigmoid(x_odd, scale=50.0))
    assert jnp.allclose(y_odd, jax.nn.sigmoid(50.0 * x_odd), atol=1e-6, rtol=1e-6)

    x_bf16 = jax.random.normal(jax.random.PRNGKey(2), (4, 8, 128), dtype=jnp.bfloat16)
    y_bf16 = jax.block_until_ready(sharp_scaled_sigmoid(x_bf16, scale=50.0))
    assert y_bf16.dtype == jnp.bfloat16 and y_bf16.shape == x_bf16.shape

    print("KERNEL_OK")
</pallas_src>

<mosaic_0001>
module attributes {stable_mosaic.version = 11 : i64} {
  func.func @_sharp_sigmoid_kernel(%arg0: i32, %arg1: memref<1x1xf32, #tpu.memory_space<smem>>, %arg2: memref<1x2048xf32, #tpu.memory_space<vmem>>, %arg3: memref<1x2048xf32, #tpu.memory_space<vmem>>) attributes {dimension_semantics = [#tpu.dimension_semantics<parallel>], iteration_bounds = array<i64: 1>, scalar_prefetch = 0 : i64, scratch_operands = 0 : i64, tpu.core_type = #tpu.core_type<tc>, window_params = [{transform_indices = @transform_0, window_bounds = array<i64: 1, 1>}, {transform_indices = @transform_1, window_bounds = array<i64: 1, 2048>}, {transform_indices = @transform_2, window_bounds = array<i64: 1, 2048>}]} {
    %c0 = arith.constant 0 : index
    %c0_0 = arith.constant 0 : index
    %0 = memref.load %arg1[%c0, %c0_0] : memref<1x1xf32, #tpu.memory_space<smem>>
    %c0_1 = arith.constant 0 : index
    %c0_2 = arith.constant 0 : index
    %1 = vector.load %arg2[%c0_1, %c0_2] : memref<1x2048xf32, #tpu.memory_space<vmem>>, vector<1x2048xf32>
    %2 = vector.broadcast %0 : f32 to vector<1x2048xf32>
    %3 = arith.mulf %2, %1 : vector<1x2048xf32>
    %4 = arith.negf %3 : vector<1x2048xf32>
    %5 = math.exp %4 : vector<1x2048xf32>
    %cst = arith.constant 1.000000e+00 : f32
    %6 = vector.broadcast %cst : f32 to vector<1x2048xf32>
    %7 = arith.addf %6, %5 : vector<1x2048xf32>
    %8 = arith.divf %6, %7 : vector<1x2048xf32>
    %c0_3 = arith.constant 0 : index
    %c0_4 = arith.constant 0 : index
    %9 = vector.load %arg3[%c0_3, %c0_4] : memref<1x2048xf32, #tpu.memory_space<vmem>>, vector<1x2048xf32>
    tpu.vector_store %arg3[%c0_3, %c0_4], %8 {strides = array<i32>} : memref<1x2048xf32, #tpu.memory_space<vmem>>, vector<1x2048xf32>,
    return
  }
  func.func @transform_0(%arg0: i32) -> (i32, i32) {
    %c0_i32 = arith.constant 0 : i32
    %c0_i32_0 = arith.constant 0 : i32
    %c0_i32_1 = arith.constant 0 : i32
    return %c0_i32, %c0_i32_0 : i32, i32
  }
  func.func @transform_1(%arg0: i32) -> (i32, i32) {
    %c0_i32 = arith.constant 0 : i32
    %c0_i32_0 = arith.constant 0 : i32
    return %arg0, %c0_i32 : i32, i32
  }
  func.func @transform_2(%arg0: i32) -> (i32, i32) {
    %c0_i32 = arith.constant 0 : i32
    %c0_i32_0 = arith.constant 0 : i32
    return %arg0, %c0_i32 : i32, i32
  }
}

</mosaic_0001>

<llo_original>
// kernel: sharp_scaled_sigmoid.1
$region0: #{sharp_scaled_sigmoid.1}
  #allocation0 [shape = 'u32[]', space=smem, size = 0x4, offset = 0x4, fixed_abs, tag = 'smem constant byte address 0x4 - core index']
  #allocation1 [shape = 'u32[144,128]{1,0:T(1,128)}', space=vmem, size = 0x12000, scoped, tag = 'internal scratch']
  #allocation2 [shape = 'f32[1,1]{1,0:T(1,128)S(6)}', space=smem, size = 0x200, scoped, tag = 'scoped memory for sharp_scaled_sigmoid.1']
  %s0 = inlined_call_operand.<no memory space> [shape: f32[1,1], index: 0, kind: input, shape index: {}]
  %s1 = inlined_call_operand.vmem [shape: f32[1,2048], index: 1, kind: input, shape index: {}]
  %s2 = inlined_call_operand.vmem [shape: f32[1,2048], index: 2, kind: output, shape index: {}]
  %s3 = sld [smem:[#allocation0]]
  $region18: #{sharp_scaled_sigmoid.1} parent=0
    _
  %s5 = ssub.s32 1, %s3
  %s6 = scalar_select 0, %s5, %s3
  %7 = sst [smem:[#allocation2]] %s0
  // Predicated region
  $region2: #{sharp_scaled_sigmoid.1} parent=0 // pred_check
    _
  $region3: #{sharp_scaled_sigmoid.1} parent=0 // pred_check_branch
    %9 = sbr.rel (0) target = $region5
  $region4: #{sharp_scaled_sigmoid.1} parent=0 // pred_region
    _
  $region5: #{sharp_scaled_sigmoid.1} parent=0 // pred_fallthru
    _
  // Predicated region
  $region6: #{sharp_scaled_sigmoid.1} parent=0 // pred_check
    _
  $region7: #{sharp_scaled_sigmoid.1} parent=0 // pred_check_branch
    %11 = sbr.rel (0) target = $region9
  $region8: #{sharp_scaled_sigmoid.1} parent=0 // pred_region
    _
  $region9: #{sharp_scaled_sigmoid.1} parent=0 // pred_fallthru
    _
  %s12 = sld [smem:[#allocation2]]
  %v13 = vld [vmem:[%s1] sm:$0xff]
  %v14 = vld [vmem:[%s1 + $0x8] sm:$0xff]
  %v15 = vstv %s12
  %v16 = vmul.f32 %v15, %v13
  %v17 = vmul.f32 %v15, %v14
  %v18 = vxor.u32 %v16, 2147483648
  %v19 = vxor.u32 %v17, 2147483648
  %v20 = vmul.f32 %v18, 1.442695
  %v21 = vpow.pop %v20
  %v22 = vmul.f32 %v19, 1.442695
  %v23 = vpow.pop %v22
  %v24 = vadd.f32 %v21, 1.0
  %v25 = vadd.f32 %v23, 1.0
  %v26 = vrcp.pop %v24
  %v27 = vmul.f32 1.0, %v26
  %v28 = vrcp.pop %v25
  %v29 = vmul.f32 1.0, %v28
  %30 = vst [vmem:[%s2] sm:$0xff] %v27
  %31 = vst [vmem:[%s2 + $0x8] sm:$0xff] %v29
  // Predicated region
  $region10: #{sharp_scaled_sigmoid.1} parent=0 // pred_check
    _
  $region11: #{sharp_scaled_sigmoid.1} parent=0 // pred_check_branch
    %33 = sbr.rel (0) target = $region13
  $region12: #{sharp_scaled_sigmoid.1} parent=0 // pred_region
    _
  $region13: #{sharp_scaled_sigmoid.1} parent=0 // pred_fallthru
    _
  // Predicated region
  $region14: #{sharp_scaled_sigmoid.1} parent=0 // pred_check
    _
  $region15: #{sharp_scaled_sigmoid.1} parent=0 // pred_check_branch
    %35 = sbr.rel (0) target = $region17
  $region16: #{sharp_scaled_sigmoid.1} parent=0 // pred_region
    _
  $region17: #{sharp_scaled_sigmoid.1} parent=0 // pred_fallthru
    _

</llo_original>
